<compile_context>
chip_gen: v6e
topology: v6e:2x2x1
jax: 0.10.0
libtpu: 0.0.40
codegen_flags: <defaults>
</compile_context>

<pallas_src>
import functools

import jax
import jax.numpy as jnp
from jax.experimental import pallas as pl
from jax.experimental.pallas import tpu as pltpu

_NEG = -1e30


def _round_up(x, m):
    return ((x + m - 1) // m) * m


def _device_defaults():
    """(tm, tv, vmem_limit_bytes) tuned per TPU generation."""
    try:
        kind = jax.devices()[0].device_kind.lower()
    except Exception:  # pragma: no cover - defensive
        kind = ""
    if "v5" in kind or "v6" in kind:
        # 128 MiB physical VMEM: big row tile, generous scoped limit.
        return 1024, 2048, 96 * 1024 * 1024
    # v7x (64 MiB VMEM) and unknown backends: conservative budget.
    return 512, 2048, 40 * 1024 * 1024


# ----------------------------------------------------------------------------
# Fused kernel
#   grid = (row_tiles [parallel], vocab_tiles [arbitrary])
# ----------------------------------------------------------------------------
def fused_kernel(x_ref, sm_ref, gum_ref, wtgt_ref, mask_ref, wdec_ref,   # in
                 emission_ref, zemb_ref, zid_ref, stats_ref,             # out
                 m_acc, s_acc, t_acc,                                    # scratch
                 *, num_state, vocab, inv_tau):
    j = pl.program_id(1)
    nj = pl.num_programs(1)

    TM, Kp = emission_ref.shape
    TV = wdec_ref.shape[1]

    # ---- per-row-tile work: emission, entropy, gumbel sample (only j == 0) --
    @pl.when(j == 0)
    def _emit_and_sample():
        x = x_ref[...]                            # (TM, D)  bf16
        sm = sm_ref[...]                          # (Kp, D)  bf16

        # emission = x_emb @ state_matrix.T  -> (TM, Kp), f32 accumulation
        em = jax.lax.dot_general(x, sm, (((1,), (1,)), ((), ())),
                                 preferred_element_type=jnp.float32)
        emission_ref[...] = em

        kiota = jax.lax.broadcasted_iota(jnp.int32, (TM, Kp), 1)
        kvalid = kiota < num_state
        em_m = jnp.where(kvalid, em, _NEG)        # mask padded states

        # entropy of softmax(emission) over the real states
        mx = jnp.max(em_m, axis=-1, keepdims=True)
        ex = jnp.exp(em_m - mx)
        s = jnp.sum(ex, axis=-1, keepdims=True)
        p = ex / s
        logp = (em_m - mx) - jnp.log(s)
        ent_tok = -jnp.sum(p * logp, axis=-1, keepdims=True)      # (TM, 1)
        ent_part = jnp.sum(ent_tok * mask_ref[...], axis=0, keepdims=True)

        sub8 = jax.lax.broadcasted_iota(jnp.int32, (8, 128), 0)
        lane = jax.lax.broadcasted_iota(jnp.int32, (8, 128), 1)
        stats_ref[...] = jnp.where((sub8 == 0) & (lane == 0),
                                   ent_part, 0.0)[None]

        # relaxed gumbel-softmax sample over latent states (noise from wrapper)
        # TODO(synk): LinearChainCRF.rsample_approx (FFBS with transitions) is
        # external; the 'softmax' proposal gumbel-softmax sample is used here.
        g = gum_ref[...]                          # (TM, Kp) f32 gumbel noise
        logits = jnp.where(kvalid, (em + g) * inv_tau, _NEG)
        mxl = jnp.max(logits, axis=-1, keepdims=True)
        el = jnp.exp(logits - mxl)
        sl = jnp.sum(el, axis=-1, keepdims=True)
        relaxed = el / sl                                          # (TM, Kp)

        # hard sample id = argmax of the perturbed logits
        zid_ref[...] = jnp.min(jnp.where(logits >= mxl, kiota, Kp),
                               axis=-1, keepdims=True)

        # z_sample_emb = relaxed @ state_matrix  -> (TM, D), stored bf16 and
        # reused as the lhs of the streamed decoder matmul.
        zemb = jnp.dot(relaxed.astype(jnp.bfloat16), sm,
                       preferred_element_type=jnp.float32)
        zemb_ref[...] = zemb.astype(jnp.bfloat16)

        # target logit = z_sample_emb . w_dec[:, tgt] (hoisted out of sweep)
        t_acc[...] = jnp.sum(zemb * wtgt_ref[...].astype(jnp.float32),
                             axis=-1, keepdims=True)

        # init online-logsumexp accumulators for the vocab sweep
        m_acc[...] = jnp.full(m_acc.shape, _NEG, jnp.float32)
        s_acc[...] = jnp.zeros(s_acc.shape, jnp.float32)

    # ---- streamed decoder projection over vocab tile j (every step) --------
    # TODO(synk): LSTMDecoder.decode_train recurrence is not available; a
    # per-token linear projection stands in for the decoder output layer.
    dlog = jnp.dot(zemb_ref[...], wdec_ref[...],
                   preferred_element_type=jnp.float32)            # (TM, TV)

    if vocab % TV != 0:
        # Only the padded vocab tail needs masking; single scalar limit,
        # all-true on non-final tiles (statically skipped when Vp == V).
        col_in_tile = jax.lax.broadcasted_iota(jnp.int32, dlog.shape, 1)
        limit = vocab - j * TV
        dlog = jnp.where(col_in_tile < limit, dlog, _NEG)

    # online max / sum-exp update
    m_prev = m_acc[...]
    m_new = jnp.maximum(m_prev, jnp.max(dlog, axis=-1, keepdims=True))
    s_acc[...] = (s_acc[...] * jnp.exp(m_prev - m_new)
                  + jnp.sum(jnp.exp(dlog - m_new), axis=-1, keepdims=True))
    m_acc[...] = m_new

    # ---- finalize per-row-tile log-prob sum (last vocab tile) --------------
    @pl.when(j == nj - 1)
    def _finalize():
        lse = m_acc[...] + jnp.log(s_acc[...])
        logp_tok = t_acc[...] - lse                               # (TM, 1)
        logp_part = jnp.sum(logp_tok * mask_ref[...], axis=0, keepdims=True)
        sub8 = jax.lax.broadcasted_iota(jnp.int32, (8, 128), 0)
        lane = jax.lax.broadcasted_iota(jnp.int32, (8, 128), 1)
        stats_ref[...] = stats_ref[...] + jnp.where(
            (sub8 == 0) & (lane == 1), logp_part, 0.0)[None]


# ----------------------------------------------------------------------------
# Parameter preparation (hoisted per-call pad / bf16 casts)
# ----------------------------------------------------------------------------
def prepare_params(params, *, tv=None):
    """Pad + cast the static operands once; cache across forward calls."""
    state_matrix = params["state_matrix"]  # (K, D) f32
    w_dec = params["w_dec"]                # (D, V) f32
    K, D = state_matrix.shape
    V = w_dec.shape[1]
    if tv is None:
        tv = _device_defaults()[1]
    TV = min(tv, _round_up(V, 128))
    Vp = _round_up(V, TV)
    Kp = _round_up(K, 128)

    sm_p = jnp.zeros((Kp, D), jnp.bfloat16).at[:K].set(
        state_matrix.astype(jnp.bfloat16))
    wdec_p = jnp.zeros((D, Vp), jnp.bfloat16).at[:, :V].set(
        w_dec.astype(jnp.bfloat16))
    wdec_t = w_dec.T.astype(jnp.bfloat16)              # (V, D) for tgt gather
    return {"sm_bf16": sm_p, "wdec_bf16": wdec_p, "wdec_t_bf16": wdec_t,
            "TV": TV, "Vp": Vp, "Kp": Kp, "K": K, "D": D, "V": V}


# ----------------------------------------------------------------------------
# Wrapper
# ----------------------------------------------------------------------------
def bertnet_forward(x, attention_mask, params, *, tau=1.0, z_beta=1.0,
                    rng=None, prepared=None, tm=None, tv=None,
                    vmem_limit_bytes=None):
    if rng is None:
        rng = jax.random.PRNGKey(1)

    tm_def, tv_def, vmem_def = _device_defaults()
    tm = tm_def if tm is None else tm
    tv = tv_def if tv is None else tv
    vmem_limit_bytes = vmem_def if vmem_limit_bytes is None else vmem_limit_bytes

    if prepared is None:
        prepared = prepare_params(params, tv=tv)

    B, L = x.shape
    enc_emb = params["enc_emb"]            # (V, D)  encoder stand-in
    state_matrix = params["state_matrix"]  # (K, D)
    K, D, V = prepared["K"], prepared["D"], prepared["V"]
    Kp, TV, Vp = prepared["Kp"], prepared["TV"], prepared["Vp"]

    M = B * L
    TM = min(tm, _round_up(M, 8))
    Mp = _round_up(M, TM)
    gm, gv = Mp // TM, Vp // TV

    mask = attention_mask.astype(jnp.float32)
    x_flat = x.reshape(M).astype(jnp.int32)

    # TODO(synk): frozen pretrained BertModel encoder is external; a
    # deterministic embedding lookup stands in for the contextual encoder.
    x_emb = enc_emb[x_flat]                # (M, D) f32

    # per-call dynamic operands (pad rows only; static operands are prepared)
    x_emb_p = jnp.zeros((Mp, D), jnp.bfloat16).at[:M].set(
        x_emb.astype(jnp.bfloat16))
    wtgt_p = jnp.zeros((Mp, D), jnp.bfloat16).at[:M].set(
        prepared["wdec_t_bf16"][x_flat])
    mask_p = jnp.zeros((Mp, 1), jnp.float32).at[:M, 0].set(mask.reshape(M))
    gum_p = jax.random.gumbel(rng, (Mp, Kp), jnp.float32)

    kernel = functools.partial(fused_kernel, num_state=K, vocab=V,
                               inv_tau=float(1.0 / tau))

    grid_spec = pltpu.PrefetchScalarGridSpec(
        num_scalar_prefetch=0,
        grid=(gm, gv),
        in_specs=[
            pl.BlockSpec((TM, D), lambda i, j: (i, 0)),     # x_emb rows
            pl.BlockSpec((Kp, D), lambda i, j: (0, 0)),     # state matrix
            pl.BlockSpec((TM, Kp), lambda i, j: (i, 0)),    # gumbel noise
            pl.BlockSpec((TM, D), lambda i, j: (i, 0)),     # w_dec[:, tgt]
            pl.BlockSpec((TM, 1), lambda i, j: (i, 0)),     # mask
            pl.BlockSpec((D, TV), lambda i, j: (0, j)),     # decoder weights
        ],
        out_specs=[
            pl.BlockSpec((TM, Kp), lambda i, j: (i, 0)),        # emission
            pl.BlockSpec((TM, D), lambda i, j: (i, 0)),         # z_sample_emb
            pl.BlockSpec((TM, 1), lambda i, j: (i, 0)),         # z_sample ids
            pl.BlockSpec((1, 8, 128), lambda i, j: (i, 0, 0)),  # [ent, logp]
        ],
        scratch_shapes=[
            pltpu.VMEM((TM, 1), jnp.float32),    # running max
            pltpu.VMEM((TM, 1), jnp.float32),    # running sum-exp
            pltpu.VMEM((TM, 1), jnp.float32),    # target logit
        ],
    )

    emission_p, zemb_p, zid_p, stats = pl.pallas_call(
        kernel,
        out_shape=(
            jax.ShapeDtypeStruct((Mp, Kp), jnp.float32),
            jax.ShapeDtypeStruct((Mp, D), jnp.bfloat16),
            jax.ShapeDtypeStruct((Mp, 1), jnp.int32),
            jax.ShapeDtypeStruct((gm, 8, 128), jnp.float32),
        ),
        grid_spec=grid_spec,
        compiler_params=pltpu.CompilerParams(
            dimension_semantics=("parallel", "arbitrary"),
            vmem_limit_bytes=vmem_limit_bytes),
    )(x_emb_p, prepared["sm_bf16"], gum_p, wtgt_p, mask_p,
      prepared["wdec_bf16"])

    # masked averages from the in-kernel partial sums
    mask_sum = jnp.sum(mask)
    ent = jnp.sum(stats[:, 0, 0]) / mask_sum
    p_log_prob = jnp.sum(stats[:, 0, 1]) / mask_sum
    loss = -(p_log_prob + z_beta * ent)

    emission = emission_p[:M, :K].reshape(B, L, K)
    z_sample_emb = zemb_p[:M].astype(jnp.float32).reshape(B, L, D)
    z_sample = zid_p[:M, 0].reshape(B, L)

    # inspect stats (transition / emission probability ranges), plain JAX glue
    transition = state_matrix @ state_matrix.T
    p_t = jax.nn.softmax(transition, axis=-1)
    p_e = jax.nn.softmax(emission, axis=-1)

    out_dict = {
        "loss": loss,
        "ent": ent,
        "p_log_prob": p_log_prob,
        "z_sample": z_sample,
        "z_sample_emb": z_sample_emb,
        "input_ids": x,
        "p_t_min": jnp.min(p_t), "p_t_max": jnp.max(p_t), "p_t_mean": jnp.mean(p_t),
        "p_e_min": jnp.min(p_e), "p_e_max": jnp.max(p_e), "p_e_mean": jnp.mean(p_e),
    }
    return loss, out_dict


def init_params(key, *, vocab_size, state_size, num_state,
                transition_init_scale=0.01):
    k1, k2, k3 = jax.random.split(key, 3)
    return {
        # stand-in for the frozen BERT encoder output
        "enc_emb": jax.random.normal(k1, (vocab_size, state_size),
                                     jnp.float32) * 0.1,
        # nn.Parameter(torch.normal(mean=0, std=transition_init_scale))
        "state_matrix": jax.random.normal(k2, (num_state, state_size),
                                          jnp.float32) * transition_init_scale,
        # decoder output projection (LSTMDecoder output layer stand-in)
        "w_dec": jax.random.normal(k3, (state_size, vocab_size),
                                   jnp.float32) * 0.1,
    }


if __name__ == "__main__":
    BATCH, MAX_LEN = 2, 8
    NUM_STATE, STATE_SIZE, VOCAB = 20, 32, 64

    key = jax.random.PRNGKey(0)
    k_tok, k_par, k_g = jax.random.split(key, 3)

    params = init_params(k_par, vocab_size=VOCAB, state_size=STATE_SIZE,
                         num_state=NUM_STATE)
    # hoisted once (cached across training steps in real use)
    prepared = prepare_params(params)

    x = jax.random.randint(k_tok, (BATCH, MAX_LEN), 1, VOCAB, dtype=jnp.int32)
    lens = jnp.array([MAX_LEN, 6], dtype=jnp.int32)
    attention_mask = (jnp.arange(MAX_LEN)[None, :] < lens[:, None]).astype(
        jnp.float32)

    loss, out = bertnet_forward(x, attention_mask, params,
                                tau=1.0, z_beta=1.0, rng=k_g,
                                prepared=prepared)
    loss = jax.block_until_ready(loss)
    jax.block_until_ready(out["z_sample_emb"])
    jax.block_until_ready(out["z_sample"])
    print("KERNEL_OK")
</pallas_src>

<mosaic_0001>
module attributes {stable_mosaic.version = 11 : i64} {
  func.func @fused_kernel(%arg0: i32, %arg1: i32, %arg2: memref<16x32xbf16, #tpu.memory_space<vmem>>, %arg3: memref<128x32xbf16, #tpu.memory_space<vmem>>, %arg4: memref<16x128xf32, #tpu.memory_space<vmem>>, %arg5: memref<16x32xbf16, #tpu.memory_space<vmem>>, %arg6: memref<16x1xf32, #tpu.memory_space<vmem>>, %arg7: memref<32x128xbf16, #tpu.memory_space<vmem>>, %arg8: memref<16x128xf32, #tpu.memory_space<vmem>>, %arg9: memref<16x32xbf16, #tpu.memory_space<vmem>>, %arg10: memref<16x1xi32, #tpu.memory_space<vmem>>, %arg11: memref<1x8x128xf32, #tpu.memory_space<vmem>>, %arg12: memref<16x1xf32, #tpu.memory_space<vmem>>, %arg13: memref<16x1xf32, #tpu.memory_space<vmem>>, %arg14: memref<16x1xf32, #tpu.memory_space<vmem>>) attributes {dimension_semantics = [#tpu.dimension_semantics<parallel>, #tpu.dimension_semantics<arbitrary>], iteration_bounds = array<i64: 1, 1>, scalar_prefetch = 0 : i64, scratch_operands = 3 : i64, tpu.core_type = #tpu.core_type<tc>, window_params = [{transform_indices = @transform_0, window_bounds = array<i64: 16, 32>}, {pipeline_mode = #tpu.pipeline_mode<synchronous>, transform_indices = @transform_1, window_bounds = array<i64: 128, 32>}, {transform_indices = @transform_2, window_bounds = array<i64: 16, 128>}, {transform_indices = @transform_3, window_bounds = array<i64: 16, 32>}, {transform_indices = @transform_4, window_bounds = array<i64: 16, 1>}, {transform_indices = @transform_5, window_bounds = array<i64: 32, 128>}, {transform_indices = @transform_6, window_bounds = array<i64: 16, 128>}, {transform_indices = @transform_7, window_bounds = array<i64: 16, 32>}, {transform_indices = @transform_8, window_bounds = array<i64: 16, 1>}, {transform_indices = @transform_9, window_bounds = array<i64: 1, 8, 128>}]} {
    %c0_i32 = arith.constant 0 : i32
    %0 = arith.cmpi eq, %arg1, %c0_i32 : i32
    %1 = arith.extui %0 : i1 to i32
    %c0_i32_0 = arith.constant 0 : i32
    %2 = arith.cmpi ne, %1, %c0_i32_0 : i32
    scf.if %2 {
      %c0_17 = arith.constant 0 : index
      %c0_18 = arith.constant 0 : index
      %32 = vector.load %arg2[%c0_17, %c0_18] : memref<16x32xbf16, #tpu.memory_space<vmem>>, vector<16x32xbf16>
      %c0_19 = arith.constant 0 : index
      %c0_20 = arith.constant 0 : index
      %33 = vector.load %arg3[%c0_19, %c0_20] : memref<128x32xbf16, #tpu.memory_space<vmem>>, vector<128x32xbf16>
      %cst_21 = arith.constant dense<0.000000e+00> : vector<16x128xf32>
      %34 = tpu.matmul %32, %33, %cst_21 {dimension_numbers = #tpu.dot_dimension_numbers<[1], [1], [0], [0], [0, 0, 1, 0], [], []>} : vector<16x32xbf16>, vector<128x32xbf16>, vector<16x128xf32> -> vector<16x128xf32>
      %c0_22 = arith.constant 0 : index
      %c0_23 = arith.constant 0 : index
      %35 = vector.load %arg8[%c0_22, %c0_23] : memref<16x128xf32, #tpu.memory_space<vmem>>, vector<16x128xf32>
      tpu.vector_store %arg8[%c0_22, %c0_23], %34 {strides = array<i32>} : memref<16x128xf32, #tpu.memory_space<vmem>>, vector<16x128xf32>,
      %36 = tpu.iota {dimensions = array<i32: 1>} : vector<16x128xi32>
      %c20_i32 = arith.constant 20 : i32
      %37 = vector.broadcast %c20_i32 : i32 to vector<16x128xi32>
      %38 = arith.cmpi slt, %36, %37 : vector<16x128xi32>
      %cst_24 = arith.constant -1.000000e+30 : f32
      %39 = vector.broadcast %cst_24 : f32 to vector<16x128xf32>
      %40 = arith.select %38, %34, %39 : vector<16x128xi1>, vector<16x128xf32>
      %cst_25 = arith.constant dense<0xFF800000> : vector<16xf32>
      %41 = vector.multi_reduction <maximumf>, %40, %cst_25 [1] : vector<16x128xf32> to vector<16xf32>
      %42 = vector.shape_cast %41 : vector<16xf32> to vector<16x1xf32>
      %43 = vector.broadcast %42 : vector<16x1xf32> to vector<16x128xf32>
      %44 = arith.subf %40, %43 : vector<16x128xf32>
      %45 = math.exp %44 : vector<16x128xf32>
      %cst_26 = arith.constant dense<0.000000e+00> : vector<16xf32>
      %46 = vector.multi_reduction <add>, %45, %cst_26 [1] : vector<16x128xf32> to vector<16xf32>
      %47 = vector.shape_cast %46 : vector<16xf32> to vector<16x1xf32>
      %48 = vector.broadcast %47 : vector<16x1xf32> to vector<16x128xf32>
      %49 = arith.divf %45, %48 : vector<16x128xf32>
      %50 = vector.broadcast %42 : vector<16x1xf32> to vector<16x128xf32>
      %51 = arith.subf %40, %50 : vector<16x128xf32>
      %52 = math.log %47 : vector<16x1xf32>
      %53 = vector.broadcast %52 : vector<16x1xf32> to vector<16x128xf32>
      %54 = arith.subf %51, %53 : vector<16x128xf32>
      %55 = arith.mulf %49, %54 : vector<16x128xf32>
      %cst_27 = arith.constant dense<0.000000e+00> : vector<16xf32>
      %56 = vector.multi_reduction <add>, %55, %cst_27 [1] : vector<16x128xf32> to vector<16xf32>
      %57 = vector.shape_cast %56 : vector<16xf32> to vector<16x1xf32>
      %cst_28 = arith.constant 0.000000e+00 : f32
      %58 = vector.broadcast %cst_28 : f32 to vector<16x1xf32>
      %59 = arith.subf %58, %57 : vector<16x1xf32>
      %c0_29 = arith.constant 0 : index
      %c0_30 = arith.constant 0 : index
      %60 = vector.load %arg6[%c0_29, %c0_30] : memref<16x1xf32, #tpu.memory_space<vmem>>, vector<16x1xf32>
      %61 = arith.mulf %59, %60 : vector<16x1xf32>
      %cst_31 = arith.constant dense<0.000000e+00> : vector<1xf32>
      %62 = vector.multi_reduction <add>, %61, %cst_31 [0] : vector<16x1xf32> to vector<1xf32>
      %63 = vector.shape_cast %62 : vector<1xf32> to vector<1x1xf32>
      %64 = tpu.iota {dimensions = array<i32: 0>} : vector<8x128xi32>
      %65 = tpu.iota {dimensions = array<i32: 1>} : vector<8x128xi32>
      %c0_i32_32 = arith.constant 0 : i32
      %66 = vector.broadcast %c0_i32_32 : i32 to vector<8x128xi32>
      %67 = arith.cmpi eq, %64, %66 : vector<8x128xi32>
      %c0_i32_33 = arith.constant 0 : i32
      %68 = vector.broadcast %c0_i32_33 : i32 to vector<8x128xi32>
      %69 = arith.cmpi eq, %65, %68 : vector<8x128xi32>
      %70 = arith.andi %67, %69 : vector<8x128xi1>
      %cst_34 = arith.constant 0.000000e+00 : f32
      %71 = vector.shape_cast %63 : vector<1x1xf32> to vector<1x1xf32>
      %72 = vector.broadcast %71 : vector<1x1xf32> to vector<8x128xf32>
      %73 = vector.broadcast %cst_34 : f32 to vector<8x128xf32>
      %74 = arith.select %70, %72, %73 : vector<8x128xi1>, vector<8x128xf32>
      %75 = vector.shape_cast %74 : vector<8x128xf32> to vector<1x8x128xf32>
      %c0_35 = arith.constant 0 : index
      %c0_36 = arith.constant 0 : index
      %c0_37 = arith.constant 0 : index
      %76 = vector.load %arg11[%c0_35, %c0_36, %c0_37] : memref<1x8x128xf32, #tpu.memory_space<vmem>>, vector<1x8x128xf32>
      tpu.vector_store %arg11[%c0_35, %c0_36, %c0_37], %75 {strides = array<i32>} : memref<1x8x128xf32, #tpu.memory_space<vmem>>, vector<1x8x128xf32>,
      %c0_38 = arith.constant 0 : index
      %c0_39 = arith.constant 0 : index
      %77 = vector.load %arg4[%c0_38, %c0_39] : memref<16x128xf32, #tpu.memory_space<vmem>>, vector<16x128xf32>
      %78 = arith.addf %34, %77 : vector<16x128xf32>
      %cst_40 = arith.constant 1.000000e+00 : f32
      %79 = vector.broadcast %cst_40 : f32 to vector<16x128xf32>
      %80 = arith.mulf %78, %79 : vector<16x128xf32>
      %cst_41 = arith.constant -1.000000e+30 : f32
      %81 = vector.broadcast %cst_41 : f32 to vector<16x128xf32>
      %82 = arith.select %38, %80, %81 : vector<16x128xi1>, vector<16x128xf32>
      %cst_42 = arith.constant dense<0xFF800000> : vector<16xf32>
      %83 = vector.multi_reduction <maximumf>, %82, %cst_42 [1] : vector<16x128xf32> to vector<16xf32>
      %84 = vector.shape_cast %83 : vector<16xf32> to vector<16x1xf32>
      %85 = vector.broadcast %84 : vector<16x1xf32> to vector<16x128xf32>
      %86 = arith.subf %82, %85 : vector<16x128xf32>
      %87 = math.exp %86 : vector<16x128xf32>
      %cst_43 = arith.constant dense<0.000000e+00> : vector<16xf32>
      %88 = vector.multi_reduction <add>, %87, %cst_43 [1] : vector<16x128xf32> to vector<16xf32>
      %89 = vector.shape_cast %88 : vector<16xf32> to vector<16x1xf32>
      %90 = vector.broadcast %89 : vector<16x1xf32> to vector<16x128xf32>
      %91 = arith.divf %87, %90 : vector<16x128xf32>
      %92 = vector.broadcast %84 : vector<16x1xf32> to vector<16x128xf32>
      %93 = arith.cmpf oge, %82, %92 : vector<16x128xf32>
      %c128_i32_44 = arith.constant 128 : i32
      %94 = vector.broadcast %c128_i32_44 : i32 to vector<16x128xi32>
      %95 = arith.select %93, %36, %94 : vector<16x128xi1>, vector<16x128xi32>
      %cst_45 = arith.constant dense<2147483647> : vector<16xi32>
      %96 = vector.multi_reduction <minsi>, %95, %cst_45 [1] : vector<16x128xi32> to vector<16xi32>
      %97 = vector.shape_cast %96 : vector<16xi32> to vector<16x1xi32>
      %c0_46 = arith.constant 0 : index
      %c0_47 = arith.constant 0 : index
      %98 = vector.load %arg10[%c0_46, %c0_47] : memref<16x1xi32, #tpu.memory_space<vmem>>, vector<16x1xi32>
      tpu.vector_store %arg10[%c0_46, %c0_47], %97 {strides = array<i32>} : memref<16x1xi32, #tpu.memory_space<vmem>>, vector<16x1xi32>,
      %99 = arith.truncf %91 : vector<16x128xf32> to vector<16x128xbf16>
      %cst_48 = arith.constant dense<0.000000e+00> : vector<16x32xf32>
      %100 = tpu.matmul %99, %33, %cst_48 {dimension_numbers = #tpu.dot_dimension_numbers<[1], [0], [0], [1], [0, 0, 1, 1], [], []>} : vector<16x128xbf16>, vector<128x32xbf16>, vector<16x32xf32> -> vector<16x32xf32>
      %101 = arith.truncf %100 : vector<16x32xf32> to vector<16x32xbf16>
      %c0_49 = arith.constant 0 : index
      %c0_50 = arith.constant 0 : index
      %102 = vector.load %arg9[%c0_49, %c0_50] : memref<16x32xbf16, #tpu.memory_space<vmem>>, vector<16x32xbf16>
      tpu.vector_store %arg9[%c0_49, %c0_50], %101 {strides = array<i32>} : memref<16x32xbf16, #tpu.memory_space<vmem>>, vector<16x32xbf16>,
      %c0_51 = arith.constant 0 : index
      %c0_52 = arith.constant 0 : index
      %103 = vector.load %arg5[%c0_51, %c0_52] : memref<16x32xbf16, #tpu.memory_space<vmem>>, vector<16x32xbf16>
      %104 = arith.extf %103 : vector<16x32xbf16> to vector<16x32xf32>
      %105 = arith.mulf %100, %104 : vector<16x32xf32>
      %cst_53 = arith.constant dense<0.000000e+00> : vector<16xf32>
      %106 = vector.multi_reduction <add>, %105, %cst_53 [1] : vector<16x32xf32> to vector<16xf32>
      %107 = vector.shape_cast %106 : vector<16xf32> to vector<16x1xf32>
      %c0_54 = arith.constant 0 : index
      %c0_55 = arith.constant 0 : index
      %108 = vector.load %arg14[%c0_54, %c0_55] : memref<16x1xf32, #tpu.memory_space<vmem>>, vector<16x1xf32>
      tpu.vector_store %arg14[%c0_54, %c0_55], %107 {strides = array<i32>} : memref<16x1xf32, #tpu.memory_space<vmem>>, vector<16x1xf32>,
      %cst_56 = arith.constant -1.000000e+30 : f32
      %109 = vector.broadcast %cst_56 : f32 to vector<16x1xf32>
      %c0_57 = arith.constant 0 : index
      %c0_58 = arith.constant 0 : index
      %110 = vector.load %arg12[%c0_57, %c0_58] : memref<16x1xf32, #tpu.memory_space<vmem>>, vector<16x1xf32>
      tpu.vector_store %arg12[%c0_57, %c0_58], %109 {strides = array<i32>} : memref<16x1xf32, #tpu.memory_space<vmem>>, vector<16x1xf32>,
      %cst_59 = arith.constant 0.000000e+00 : f32
      %111 = vector.broadcast %cst_59 : f32 to vector<16x1xf32>
      %c0_60 = arith.constant 0 : index
      %c0_61 = arith.constant 0 : index
      %112 = vector.load %arg13[%c0_60, %c0_61] : memref<16x1xf32, #tpu.memory_space<vmem>>, vector<16x1xf32>
      tpu.vector_store %arg13[%c0_60, %c0_61], %111 {strides = array<i32>} : memref<16x1xf32, #tpu.memory_space<vmem>>, vector<16x1xf32>,
    } else {
    }
    %c0 = arith.constant 0 : index
    %c0_1 = arith.constant 0 : index
    %3 = vector.load %arg9[%c0, %c0_1] : memref<16x32xbf16, #tpu.memory_space<vmem>>, vector<16x32xbf16>
    %c0_2 = arith.constant 0 : index
    %c0_3 = arith.constant 0 : index
    %4 = vector.load %arg7[%c0_2, %c0_3] : memref<32x128xbf16, #tpu.memory_space<vmem>>, vector<32x128xbf16>
    %cst = arith.constant dense<0.000000e+00> : vector<16x128xf32>
    %5 = tpu.matmul %3, %4, %cst {dimension_numbers = #tpu.dot_dimension_numbers<[1], [0], [0], [1], [0, 0, 1, 1], [], []>} : vector<16x32xbf16>, vector<32x128xbf16>, vector<16x128xf32> -> vector<16x128xf32>
    %6 = tpu.iota {dimensions = array<i32: 1>} : vector<16x128xi32>
    %c128_i32 = arith.constant 128 : i32
    %7 = arith.muli %arg1, %c128_i32 : i32
    %c64_i32 = arith.constant 64 : i32
    %8 = arith.subi %c64_i32, %7 : i32
    %9 = vector.broadcast %8 : i32 to vector<16x128xi32>
    %10 = arith.cmpi slt, %6, %9 : vector<16x128xi32>
    %cst_4 = arith.constant -1.000000e+30 : f32
    %11 = vector.broadcast %cst_4 : f32 to vector<16x128xf32>
    %12 = arith.select %10, %5, %11 : vector<16x128xi1>, vector<16x128xf32>
    %c0_5 = arith.constant 0 : index
    %c0_6 = arith.constant 0 : index
    %13 = vector.load %arg12[%c0_5, %c0_6] : memref<16x1xf32, #tpu.memory_space<vmem>>, vector<16x1xf32>
    %cst_7 = arith.constant dense<0xFF800000> : vector<16xf32>
    %14 = vector.multi_reduction <maximumf>, %12, %cst_7 [1] : vector<16x128xf32> to vector<16xf32>
    %15 = vector.shape_cast %14 : vector<16xf32> to vector<16x1xf32>
    %16 = arith.maximumf %13, %15 : vector<16x1xf32>
    %c0_8 = arith.constant 0 : index
    %c0_9 = arith.constant 0 : index
    %17 = vector.load %arg13[%c0_8, %c0_9] : memref<16x1xf32, #tpu.memory_space<vmem>>, vector<16x1xf32>
    %18 = arith.subf %13, %16 : vector<16x1xf32>
    %19 = math.exp %18 : vector<16x1xf32>
    %20 = arith.mulf %17, %19 : vector<16x1xf32>
    %21 = vector.broadcast %16 : vector<16x1xf32> to vector<16x128xf32>
    %22 = arith.subf %12, %21 : vector<16x128xf32>
    %23 = math.exp %22 : vector<16x128xf32>
    %cst_10 = arith.constant dense<0.000000e+00> : vector<16xf32>
    %24 = vector.multi_reduction <add>, %23, %cst_10 [1] : vector<16x128xf32> to vector<16xf32>
    %25 = vector.shape_cast %24 : vector<16xf32> to vector<16x1xf32>
    %26 = arith.addf %20, %25 : vector<16x1xf32>
    %c0_11 = arith.constant 0 : index
    %c0_12 = arith.constant 0 : index
    %27 = vector.load %arg13[%c0_11, %c0_12] : memref<16x1xf32, #tpu.memory_space<vmem>>, vector<16x1xf32>
    tpu.vector_store %arg13[%c0_11, %c0_12], %26 {strides = array<i32>} : memref<16x1xf32, #tpu.memory_space<vmem>>, vector<16x1xf32>,
    %c0_13 = arith.constant 0 : index
    %c0_14 = arith.constant 0 : index
    %28 = vector.load %arg12[%c0_13, %c0_14] : memref<16x1xf32, #tpu.memory_space<vmem>>, vector<16x1xf32>
    tpu.vector_store %arg12[%c0_13, %c0_14], %16 {strides = array<i32>} : memref<16x1xf32, #tpu.memory_space<vmem>>, vector<16x1xf32>,
    %c0_i32_15 = arith.constant 0 : i32
    %29 = arith.cmpi eq, %arg1, %c0_i32_15 : i32
    %30 = arith.extui %29 : i1 to i32
    %c0_i32_16 = arith.constant 0 : i32
    %31 = arith.cmpi ne, %30, %c0_i32_16 : i32
    scf.if %31 {
      %c0_17 = arith.constant 0 : index
      %c0_18 = arith.constant 0 : index
      %32 = vector.load %arg12[%c0_17, %c0_18] : memref<16x1xf32, #tpu.memory_space<vmem>>, vector<16x1xf32>
      %c0_19 = arith.constant 0 : index
      %c0_20 = arith.constant 0 : index
      %33 = vector.load %arg13[%c0_19, %c0_20] : memref<16x1xf32, #tpu.memory_space<vmem>>, vector<16x1xf32>
      %34 = math.log %33 : vector<16x1xf32>
      %35 = arith.addf %32, %34 : vector<16x1xf32>
      %c0_21 = arith.constant 0 : index
      %c0_22 = arith.constant 0 : index
      %36 = vector.load %arg14[%c0_21, %c0_22] : memref<16x1xf32, #tpu.memory_space<vmem>>, vector<16x1xf32>
      %37 = arith.subf %36, %35 : vector<16x1xf32>
      %c0_23 = arith.constant 0 : index
      %c0_24 = arith.constant 0 : index
      %38 = vector.load %arg6[%c0_23, %c0_24] : memref<16x1xf32, #tpu.memory_space<vmem>>, vector<16x1xf32>
      %39 = arith.mulf %37, %38 : vector<16x1xf32>
      %cst_25 = arith.constant dense<0.000000e+00> : vector<1xf32>
      %40 = vector.multi_reduction <add>, %39, %cst_25 [0] : vector<16x1xf32> to vector<1xf32>
      %41 = vector.shape_cast %40 : vector<1xf32> to vector<1x1xf32>
      %42 = tpu.iota {dimensions = array<i32: 0>} : vector<8x128xi32>
      %43 = tpu.iota {dimensions = array<i32: 1>} : vector<8x128xi32>
      %c0_26 = arith.constant 0 : index
      %c0_27 = arith.constant 0 : index
      %c0_28 = arith.constant 0 : index
      %44 = vector.load %arg11[%c0_26, %c0_27, %c0_28] : memref<1x8x128xf32, #tpu.memory_space<vmem>>, vector<1x8x128xf32>
      %c0_i32_29 = arith.constant 0 : i32
      %45 = vector.broadcast %c0_i32_29 : i32 to vector<8x128xi32>
      %46 = arith.cmpi eq, %42, %45 : vector<8x128xi32>
      %c1_i32 = arith.constant 1 : i32
      %47 = vector.broadcast %c1_i32 : i32 to vector<8x128xi32>
      %48 = arith.cmpi eq, %43, %47 : vector<8x128xi32>
      %49 = arith.andi %46, %48 : vector<8x128xi1>
      %cst_30 = arith.constant 0.000000e+00 : f32
      %50 = vector.shape_cast %41 : vector<1x1xf32> to vector<1x1xf32>
      %51 = vector.broadcast %50 : vector<1x1xf32> to vector<8x128xf32>
      %52 = vector.broadcast %cst_30 : f32 to vector<8x128xf32>
      %53 = arith.select %49, %51, %52 : vector<8x128xi1>, vector<8x128xf32>
      %54 = vector.shape_cast %53 : vector<8x128xf32> to vector<1x8x128xf32>
      %55 = arith.addf %44, %54 : vector<1x8x128xf32>
      %c0_31 = arith.constant 0 : index
      %c0_32 = arith.constant 0 : index
      %c0_33 = arith.constant 0 : index
      %56 = vector.load %arg11[%c0_31, %c0_32, %c0_33] : memref<1x8x128xf32, #tpu.memory_space<vmem>>, vector<1x8x128xf32>
      tpu.vector_store %arg11[%c0_31, %c0_32, %c0_33], %55 {strides = array<i32>} : memref<1x8x128xf32, #tpu.memory_space<vmem>>, vector<1x8x128xf32>,
    } else {
    }
    return
  }
  func.func @transform_0(%arg0: i32, %arg1: i32) -> (i32, i32) {
    %c0_i32 = arith.constant 0 : i32
    %c0_i32_0 = arith.constant 0 : i32
    return %arg0, %c0_i32 : i32, i32
  }
  func.func @transform_1(%arg0: i32, %arg1: i32) -> (i32, i32) {
    %c0_i32 = arith.constant 0 : i32
    %c0_i32_0 = arith.constant 0 : i32
    %c0_i32_1 = arith.constant 0 : i32
    return %c0_i32, %c0_i32_0 : i32, i32
  }
  func.func @transform_2(%arg0: i32, %arg1: i32) -> (i32, i32) {
    %c0_i32 = arith.constant 0 : i32
    %c0_i32_0 = arith.constant 0 : i32
    return %arg0, %c0_i32 : i32, i32
  }
  func.func @transform_3(%arg0: i32, %arg1: i32) -> (i32, i32) {
    %c0_i32 = arith.constant 0 : i32
    %c0_i32_0 = arith.constant 0 : i32
    return %arg0, %c0_i32 : i32, i32
  }
  func.func @transform_4(%arg0: i32, %arg1: i32) -> (i32, i32) {
    %c0_i32 = arith.constant 0 : i32
    %c0_i32_0 = arith.constant 0 : i32
    return %arg0, %c0_i32 : i32, i32
  }
  func.func @transform_5(%arg0: i32, %arg1: i32) -> (i32, i32) {
    %c0_i32 = arith.constant 0 : i32
    %c0_i32_0 = arith.constant 0 : i32
    return %c0_i32, %arg1 : i32, i32
  }
  func.func @transform_6(%arg0: i32, %arg1: i32) -> (i32, i32) {
    %c0_i32 = arith.constant 0 : i32
    %c0_i32_0 = arith.constant 0 : i32
    return %arg0, %c0_i32 : i32, i32
  }
  func.func @transform_7(%arg0: i32, %arg1: i32) -> (i32, i32) {
    %c0_i32 = arith.constant 0 : i32
    %c0_i32_0 = arith.constant 0 : i32
    return %arg0, %c0_i32 : i32, i32
  }
  func.func @transform_8(%arg0: i32, %arg1: i32) -> (i32, i32) {
    %c0_i32 = arith.constant 0 : i32
    %c0_i32_0 = arith.constant 0 : i32
    return %arg0, %c0_i32 : i32, i32
  }
  func.func @transform_9(%arg0: i32, %arg1: i32) -> (i32, i32, i32) {
    %c0_i32 = arith.constant 0 : i32
    %c0_i32_0 = arith.constant 0 : i32
    %c0_i32_1 = arith.constant 0 : i32
    return %arg0, %c0_i32, %c0_i32_0 : i32, i32, i32
  }
}

</mosaic_0001>

<llo_original>
// kernel: tpu_custom_call.1
$region0: #{tpu_custom_call.1}
  #allocation0 [shape = 'u32[]', space=smem, size = 0x4, offset = 0x4, fixed_abs, tag = 'smem constant byte address 0x4 - core index']
  #allocation1 [shape = 'u32[144,128]{1,0:T(1,128)}', space=vmem, size = 0x12000, scoped, tag = 'internal scratch']
  #allocation2 [shape = 'f32[16,1]{1,0:T(8,128)}', space=vmem, size = 0x2000, scoped, tag = 'scratch operand']
  #allocation3 [shape = 'f32[16,1]{1,0:T(8,128)}', space=vmem, size = 0x2000, scoped, tag = 'scratch operand']
  #allocation4 [shape = 'f32[16,1]{1,0:T(8,128)}', space=vmem, size = 0x2000, scoped, tag = 'scratch operand']
  %s0 = inlined_call_operand.vmem [shape: bf16[16,32], index: 0, kind: input, shape index: {}]
  %s1 = inlined_call_operand.vmem [shape: bf16[128,32], index: 1, kind: input, shape index: {}]
  %s2 = inlined_call_operand.vmem [shape: f32[16,128], index: 2, kind: input, shape index: {}]
  %s3 = inlined_call_operand.vmem [shape: bf16[16,32], index: 3, kind: input, shape index: {}]
  %s4 = inlined_call_operand.vmem [shape: f32[16,1], index: 4, kind: input, shape index: {}]
  %s5 = inlined_call_operand.vmem [shape: bf16[32,128], index: 5, kind: input, shape index: {}]
  %s6 = inlined_call_operand.hbm [shape: f32[16,128], index: 6, kind: output, shape index: {0}]
  %s7 = inlined_call_operand.hbm [shape: bf16[16,32], index: 7, kind: output, shape index: {1}]
  %s8 = inlined_call_operand.vmem [shape: s32[16,1], index: 8, kind: output, shape index: {2}]
  %s9 = inlined_call_operand.hbm [shape: f32[1,8,128], index: 9, kind: output, shape index: {3}]
  %10 = xla_tuple %s6, %s7, %s8, %s9
  %s11 = sld [smem:[#allocation0]]
  $region66: #{tpu_custom_call.1} parent=0
    _
  %s13 = ssub.s32 1, %s11
  %s14 = scalar_select 0, %s13, %s11
  $region1: #{tpu_custom_call.1} parent=0
    #allocation5 [shape = 'u8[8192]{0}', space=vmem, size = 0x2000, scoped, tag = 'output window, operand 0, single buffered']
    #allocation6 [shape = 's32[1]{0}', space=sflag, size = 0x4, scoped, tag = 'scoped memory for tpu_custom_call.1']
    #allocation7 [shape = 'u8[4096]{0}', space=vmem, size = 0x1000, scoped, tag = 'output window, operand 1, single buffered']
    #allocation8 [shape = 's32[1]{0}', space=sflag, size = 0x4, scoped, tag = 'scoped memory for tpu_custom_call.1']
    #allocation9 [shape = 'u8[4096]{0}', space=vmem, size = 0x1000, scoped, tag = 'output window, operand 3, single buffered']
    %15 = vsyncpa [#allocation6], 0
    %16 = vsyncpa [#allocation8], 0
    // Predicated region
    $region2: #{tpu_custom_call.1} parent=1 // pred_check
      _
    $region3: #{tpu_custom_call.1} parent=1 // pred_check_branch
      %18 = sbr.rel (0) target = $region5
    $region4: #{tpu_custom_call.1} parent=1 // pred_region
      _
    $region5: #{tpu_custom_call.1} parent=1 // pred_fallthru
      _
    // Predicated region
    $region6: #{tpu_custom_call.1} parent=1 // pred_check
      _
    $region7: #{tpu_custom_call.1} parent=1 // pred_check_branch
      %20 = sbr.rel (0) target = $region9
    $region8: #{tpu_custom_call.1} parent=1 // pred_region
      _
    $region9: #{tpu_custom_call.1} parent=1 // pred_fallthru
      _
    // Predicated region
    $region10: #{tpu_custom_call.1} parent=1 // pred_check
      _
    $region11: #{tpu_custom_call.1} parent=1 // pred_check_branch
      %22 = sbr.rel (0) target = $region13
    $region12: #{tpu_custom_call.1} parent=1 // pred_region
      _
    $region13: #{tpu_custom_call.1} parent=1 // pred_fallthru
      _
    // Predicated region
    $region14: #{tpu_custom_call.1} parent=1 // pred_check
      _
    $region15: #{tpu_custom_call.1} parent=1 // pred_check_branch
      %24 = sbr.rel (0) target = $region17
    $region16: #{tpu_custom_call.1} parent=1 // pred_region
      _
    $region17: #{tpu_custom_call.1} parent=1 // pred_fallthru
      _
    // Predicated region
    $region18: #{tpu_custom_call.1} parent=1 // pred_check
      _
    $region19: #{tpu_custom_call.1} parent=1 // pred_check_branch
      %26 = sbr.rel (0) target = $region21
    $region20: #{tpu_custom_call.1} parent=1 // pred_region
      _
    $region21: #{tpu_custom_call.1} parent=1 // pred_fallthru
      _
    // Predicated region
    $region22: #{tpu_custom_call.1} parent=1 // pred_check
      _
    $region23: #{tpu_custom_call.1} parent=1 // pred_check_branch
      %28 = sbr.rel (0) target = $region25
    $region24: #{tpu_custom_call.1} parent=1 // pred_region
      _
    $region25: #{tpu_custom_call.1} parent=1 // pred_fallthru
      _
    %p30 = scmp.eq.s32.totalorder 0, 0
    // Predicated region
    $region26: #{tpu_custom_call.1} parent=1 // pred_check
      %p31 = pneg %p30
    $region27: #{tpu_custom_call.1} parent=1 // pred_check_branch
      %33 = sbr.rel (%p31) target = $region29
    $region28: #{tpu_custom_call.1} parent=1 // pred_region
      %v34 = vld [vmem:[%s0] sm:$0xf]
      %v35 = vld [vmem:[%s0 + $0x4] sm:$0xf]
      %v36 = vld [vmem:[%s1] sm:$0xf]
      %v37 = vld [vmem:[%s1 + $0x4] sm:$0xf]
      %v38 = vld [vmem:[%s1 + $0x8] sm:$0xf]
      %v39 = vld [vmem:[%s1 + $0xc] sm:$0xf]
      %v40 = vld [vmem:[%s1 + $0x10] sm:$0xf]
      %v41 = vld [vmem:[%s1 + $0x14] sm:$0xf]
      %v42 = vld [vmem:[%s1 + $0x18] sm:$0xf]
      %v43 = vld [vmem:[%s1 + $0x1c] sm:$0xf]
      %v44 = vld [vmem:[%s1 + $0x20] sm:$0xf]
      %v45 = vld [vmem:[%s1 + $0x24] sm:$0xf]
      %v46 = vld [vmem:[%s1 + $0x28] sm:$0xf]
      %v47 = vld [vmem:[%s1 + $0x2c] sm:$0xf]
      %v48 = vld [vmem:[%s1 + $0x30] sm:$0xf]
      %v49 = vld [vmem:[%s1 + $0x34] sm:$0xf]
      %v50 = vld [vmem:[%s1 + $0x38] sm:$0xf]
      %v51 = vld [vmem:[%s1 + $0x3c] sm:$0xf]
      %v54 = vunpack.c.l.b16 %v34
      %v55 = vunpack.c.l.b16 %v35
      %v56 = vpack.c.b16 %v55, %v54
      %v73 = vunpack.c.l.b16 %v36
      %v74 = vunpack.c.l.b16 %v37
      %v75 = vunpack.c.l.b16 %v38
      %v76 = vunpack.c.l.b16 %v39
      %v77 = vunpack.c.l.b16 %v40
      %v78 = vunpack.c.l.b16 %v41
      %v79 = vunpack.c.l.b16 %v42
      %v80 = vunpack.c.l.b16 %v43
      %v81 = vunpack.c.l.b16 %v44
      %v82 = vunpack.c.l.b16 %v45
      %v83 = vunpack.c.l.b16 %v46
      %v84 = vunpack.c.l.b16 %v47
      %v85 = vunpack.c.l.b16 %v48
      %v86 = vunpack.c.l.b16 %v49
      %v87 = vunpack.c.l.b16 %v50
      %v88 = vunpack.c.l.b16 %v51
      %v89 = vpack.c.b16 %v74, %v73
      %v90 = vpack.c.b16 %v76, %v75
      %v91 = vpack.c.b16 %v78, %v77
      %v92 = vpack.c.b16 %v80, %v79
      %v93 = vpack.c.b16 %v82, %v81
      %v94 = vpack.c.b16 %v84, %v83
      %v95 = vpack.c.b16 %v86, %v85
      %v96 = vpack.c.b16 %v88, %v87
      %vm97 = vcmask 261120
      %v99 = vsel %vm97, %v56, 0
      %v102 = vsel %vm97, %v89, 0
      %v105 = vsel %vm97, %v90, 0
      %v108 = vsel %vm97, %v91, 0
      %v111 = vsel %vm97, %v92, 0
      %v114 = vsel %vm97, %v93, 0
      %v117 = vsel %vm97, %v94, 0
      %v120 = vsel %vm97, %v95, 0
      %v123 = vsel %vm97, %v96, 0
      %125 = vmatprep.subr.bf16.mxu0 0
      %126 = vmatpush1.bf16.xpose.msra.mxu0 %v123
      %127 = vmatprep.subr.bf16.mxu0 0
      %128 = vmatpush1.bf16.xpose.msra.mxu0 %v120
      %129 = vmatprep.subr.bf16.mxu0 0
      %130 = vmatpush1.bf16.xpose.msra.mxu0 %v117
      %131 = vmatprep.subr.bf16.mxu0 0
      %132 = vmatpush1.bf16.xpose.msra.mxu0 %v114
      %133 = vmatprep.subr.bf16.mxu0 0
      %134 = vmatpush1.bf16.xpose.msra.mxu0 %v111
      %135 = vmatprep.subr.bf16.mxu0 0
      %136 = vmatpush1.bf16.xpose.msra.mxu0 %v108
      %137 = vmatprep.subr.bf16.mxu0 0
      %138 = vmatpush1.bf16.xpose.msra.mxu0 %v105
      %139 = vmatprep.subr.bf16.mxu0 0
      %140 = vmatpush1.bf16.xpose.msra.mxu0 %v102
      %141 = vmatprep.subr.bf16.mxu0 0
      %142 = vmatpush2.bf16.xpose.msra.mxu0 0
      %143 = vmatprep.subr.bf16.mxu0 0
      %144 = vmatpush2.bf16.xpose.msra.mxu0 0
      %145 = vmatprep.subr.bf16.mxu0 0
      %146 = vmatpush2.bf16.xpose.msra.mxu0 0
      %147 = vmatprep.subr.bf16.mxu0 0
      %148 = vmatpush2.bf16.xpose.msra.mxu0 0
      %149 = vmatprep.subr.bf16.mxu0 0
      %150 = vmatpush2.bf16.xpose.msra.mxu0 0
      %151 = vmatprep.subr.bf16.mxu0 0
      %152 = vmatpush2.bf16.xpose.msra.mxu0 0
      %153 = vmatprep.subr.bf16.mxu0 0
      %154 = vmatpush2.bf16.xpose.msra.mxu0 0
      %155 = vmatprep.subr.bf16.mxu0 0
      %156 = vmatpush2.bf16.xpose.msra.mxu0 0
      %157 = vmatprep.mubr.bf16.mxu0 0
      %158 = vmatmul.mubr.bf16.gmra.mxu0 %v99
      %v159 = vpop.f32.mrf.mxu0
      %v160 = vadd.f32 0.0, %v159
      %v161 = vpop.f32.mrf.mxu0
      %v162 = vpop.f32.mrf.mxu0
      %v163 = vadd.f32 0.0, %v162
      %v164 = vpop.f32.mrf.mxu0
      %165 = vdwg.mxu0
      %166 = vst [vmem:[#allocation5] sm:$0xff] %v160
      %167 = vst [vmem:[#allocation5 + $0x8] sm:$0xff] %v163
      %v168 = vlaneseq
      %v169 = vand.u32 %v168, 127
      %vm170 = vcmp.lt.s32.totalorder %v169, 20
      %v171 = vsel %vm170, %v160, -1e+30
      %v172 = vsel %vm170, %v163, -1e+30
      %173 = vmax.xlane.f32.xlu0 %v171
      %v174 = vpop.xlane.xlu0 %173
      %175 = vmax.xlane.f32.xlu0 %v172
      %v176 = vpop.xlane.xlu0 %175
      %v177 = vsub.f32 %v171, %v174
      %v178 = vsub.f32 %v172, %v176
      %v179 = vmul.f32 %v177, 1.442695
      %v180 = vpow.pop %v179
      %v181 = vmul.f32 %v178, 1.442695
      %v182 = vpow.pop %v181
      %183 = vadd.xlane.f32.xlu0 %v180
      %v184 = vpop.xlane.xlu0 %183
      %185 = vadd.xlane.f32.xlu0 %v182
      %v186 = vpop.xlane.xlu0 %185
      %v187 = vrcp.pop %v184
      %v188 = vmul.f32 %v180, %v187
      %v189 = vrcp.pop %v186
      %v190 = vmul.f32 %v182, %v189
      %v191 = vlog2.pop %v184
      %v192 = vmul.f32 %v191, 0.6931472
      %v193 = vlog2.pop %v186
      %v194 = vmul.f32 %v193, 0.6931472
      %v195 = vsub.f32 %v177, %v192
      %v196 = vsub.f32 %v178, %v194
      %v197 = vmul.f32 %v188, %v195
      %v198 = vmul.f32 %v190, %v196
      %199 = vadd.xlane.f32.xlu0 %v197
      %v200 = vpop.xlane.xlu0 %199
      %201 = vadd.xlane.f32.xlu0 %v198
      %v202 = vpop.xlane.xlu0 %201
      %v203 = vsub.f32 0.0, %v200
      %v204 = vsub.f32 0.0, %v202
      %v205 = vld [vmem:[%s4] sm:$0xff]
      %v206 = vld [vmem:[%s4 + $0x8] sm:$0xff]
      %v207 = vmul.f32 %v203, %v205
      %v208 = vmul.f32 %v204, %v206
      %vm209 = vcmask 7168
      %v210 = vsel %vm209, %v207, 0.0
      %v211 = vsel %vm209, %v208, 0.0
      %v212 = vadd.f32 %v210, %v211
      %v213 = vrot.slane %v212, 4
      %v214 = vadd.f32 %v212, %v213
      %v215 = vrot.slane %v214, 2
      %v216 = vadd.f32 %v214, %v215
      %v217 = vrot.slane %v216, 1
      %v218 = vadd.f32 %v216, %v217
      %v219 = vlaneseq
      %v220 = vshrl.u32 %v219, 7
      %vm221 = vcmp.eq.s32.totalorder %v220, 0
      %vm222 = vcmp.eq.s32.totalorder %v169, 0
      %vm223 = vmand %vm221, %vm222
      %225 = vset.pattern.permute.xlu0 0
      %226 = vperm.xlu0 %225, %v218
      %v227 = vpop.permute.xlu0 %226
      %v229 = vsel %vm223, %v227, 0.0
      %230 = vst [vmem:[#allocation9] sm:$0xff] %v229
      %v231 = vld [vmem:[%s2] sm:$0xff]
      %v232 = vld [vmem:[%s2 + $0x8] sm:$0xff]
      %v233 = vadd.f32 %v160, %v231
      %v234 = vadd.f32 %v163, %v232
      %v235 = vsel %vm170, %v233, -1e+30
      %v236 = vsel %vm170, %v234, -1e+30
      %237 = vmax.xlane.f32.xlu0 %v235
      %v238 = vpop.xlane.xlu0 %237
      %239 = vmax.xlane.f32.xlu0 %v236
      %v240 = vpop.xlane.xlu0 %239
      %v241 = vsub.f32 %v235, %v238
      %v242 = vsub.f32 %v236, %v240
      %v243 = vmul.f32 %v241, 1.442695
      %v244 = vpow.pop %v243
      %v245 = vmul.f32 %v242, 1.442695
      %v246 = vpow.pop %v245
      %247 = vadd.xlane.f32.xlu0 %v244
      %v248 = vpop.xlane.xlu0 %247
      %249 = vadd.xlane.f32.xlu0 %v246
      %v250 = vpop.xlane.xlu0 %249
      %v251 = vrcp.pop %v248
      %v252 = vmul.f32 %v244, %v251
      %v253 = vrcp.pop %v250
      %v254 = vmul.f32 %v246, %v253
      %vm255 = vcmp.ge.f32.partialorder %v235, %v238
      %vm256 = vcmp.ge.f32.partialorder %v236, %v240
      %v257 = vsel %vm255, %v169, 128
      %v258 = vsel %vm256, %v169, 128
      %v259 = vand.u32 %v257, 65535
      %v260 = vshra.s32 %v257, 16
      %v261 = vcvt.s32.f32 %v259
      %v262 = vcvt.s32.f32 %v260
      %263 = vmin.xlane.f32.xlu0 %v262
      %v264 = vpop.xlane.xlu0 %263
      %vm265 = vcmp.eq.f32.partialorder %v262, %v264
      %v266 = vsel %vm265, %v261, inf
      %267 = vmin.xlane.f32.xlu0 %v266
      %v268 = vpop.xlane.xlu0 %267
      %v269 = vcvt.f32.s32 %v268
      %v270 = vcvt.f32.s32 %v264
      %v271 = vshll.u32 %v270, 16
      %v272 = vadd.s32 %v271, %v269
      %v273 = vand.u32 %v258, 65535
      %v274 = vshra.s32 %v258, 16
      %v275 = vcvt.s32.f32 %v273
      %v276 = vcvt.s32.f32 %v274
      %277 = vmin.xlane.f32.xlu0 %v276
      %v278 = vpop.xlane.xlu0 %277
      %vm279 = vcmp.eq.f32.partialorder %v276, %v278
      %v280 = vsel %vm279, %v275, inf
      %281 = vmin.xlane.f32.xlu0 %v280
      %v282 = vpop.xlane.xlu0 %281
      %v283 = vcvt.f32.s32 %v282
      %v284 = vcvt.f32.s32 %v278
      %v285 = vshll.u32 %v284, 16
      %v286 = vadd.s32 %v285, %v283
      %287 = vst.msk [vmem:[%s8] sm:$0xff] %vm209, %v272
      %288 = vst.msk [vmem:[%s8 + $0x8] sm:$0xff] %vm209, %v286
      %v289 = vpack.c.bf16 %v254, %v252
      %298 = vmatprep.subr.bf16.mxu0 0
      %299 = vmatpush1.bf16.msra.mxu0 %v96
      %300 = vmatprep.subr.bf16.mxu0 0
      %301 = vmatpush1.bf16.msra.mxu0 %v95
      %302 = vmatprep.subr.bf16.mxu0 0
      %303 = vmatpush1.bf16.msra.mxu0 %v94
      %304 = vmatprep.subr.bf16.mxu0 0
      %305 = vmatpush1.bf16.msra.mxu0 %v93
      %306 = vmatprep.subr.bf16.mxu0 0
      %307 = vmatpush1.bf16.msra.mxu0 %v92
      %308 = vmatprep.subr.bf16.mxu0 0
      %309 = vmatpush1.bf16.msra.mxu0 %v91
      %310 = vmatprep.subr.bf16.mxu0 0
      %311 = vmatpush1.bf16.msra.mxu0 %v90
      %312 = vmatprep.subr.bf16.mxu0 0
      %313 = vmatpush1.bf16.msra.mxu0 %v89
      %314 = vmatprep.subr.bf16.mxu0 0
      %315 = vmatpush2.bf16.msra.mxu0 0
      %316 = vmatprep.subr.bf16.mxu0 0
      %317 = vmatpush2.bf16.msra.mxu0 0
      %318 = vmatprep.subr.bf16.mxu0 0
      %319 = vmatpush2.bf16.msra.mxu0 0
      %320 = vmatprep.subr.bf16.mxu0 0
      %321 = vmatpush2.bf16.msra.mxu0 0
      %322 = vmatprep.subr.bf16.mxu0 0
      %323 = vmatpush2.bf16.msra.mxu0 0
      %324 = vmatprep.subr.bf16.mxu0 0
      %325 = vmatpush2.bf16.msra.mxu0 0
      %326 = vmatprep.subr.bf16.mxu0 0
      %327 = vmatpush2.bf16.msra.mxu0 0
      %328 = vmatprep.subr.bf16.mxu0 0
      %329 = vmatpush2.bf16.msra.mxu0 0
      %330 = vmatprep.mubr.bf16.mxu0 0
      %331 = vmatmul.mubr.bf16.gmra.mxu0 %v289
      %v332 = vpop.f32.mrf.mxu0
      %v333 = vadd.f32 0.0, %v332
      %v334 = vpop.f32.mrf.mxu0
      %v335 = vpop.f32.mrf.mxu0
      %v336 = vadd.f32 0.0, %v335
      %v337 = vpop.f32.mrf.mxu0
      %338 = vdwg.mxu0
      %v339 = vpack.c.bf16 %v336, %v333
      %v341 = vunpack.c.l.b16 %v339
      %v342 = vunpack.c.h.b16 %v339
      %v343 = vpack.c.b16 %v341, %v341
      %v344 = vpack.c.b16 %v342, %v342
      %vm347 = vcmask 257024
      %348 = vst.msk [vmem:[#allocation7] sm:$0xf] %vm347, %v343
      %349 = vst.msk [vmem:[#allocation7 + $0x4] sm:$0xf] %vm347, %v344
      %v350 = vld [vmem:[%s3] sm:$0xf]
      %v351 = vld [vmem:[%s3 + $0x4] sm:$0xf]
      %v352 = vunpack.c.l.bf16 %v350
      %v353 = vunpack.c.l.bf16 %v351
      %v354 = vmul.f32 %v333, %v352
      %v355 = vmul.f32 %v336, %v353
      %v356 = vsel %vm97, %v354, 0.0
      %357 = vadd.xlane.f32.xlu0 %v356
      %v358 = vpop.xlane.xlu0 %357
      %v359 = vsel %vm97, %v355, 0.0
      %360 = vadd.xlane.f32.xlu0 %v359
      %v361 = vpop.xlane.xlu0 %360
      %362 = vst.msk [vmem:[#allocation4] sm:$0xff] %vm209, %v358
      %363 = vst.msk [vmem:[#allocation4 + $0x8] sm:$0xff] %vm209, %v361
      %364 = vst.msk [vmem:[#allocation2] sm:$0xff] %vm209, -1e+30
      %365 = vst.msk [vmem:[#allocation2 + $0x8] sm:$0xff] %vm209, -1e+30
      %366 = vst.msk [vmem:[#allocation3] sm:$0xff] %vm209, 0.0
      %367 = vst.msk [vmem:[#allocation3 + $0x8] sm:$0xff] %vm209, 0.0
    $region29: #{tpu_custom_call.1} parent=1 // pred_fallthru
      _
    %v368 = vld [vmem:[#allocation7] sm:$0xf]
    %v369 = vld [vmem:[#allocation7 + $0x4] sm:$0xf]
    %v370 = vld [vmem:[%s5] sm:$0xf]
    %v371 = vld [vmem:[%s5 + $0x4] sm:$0xf]
    %v372 = vld [vmem:[%s5 + $0x8] sm:$0xf]
    %v373 = vld [vmem:[%s5 + $0xc] sm:$0xf]
    %v376 = vunpack.c.l.b16 %v368
    %v377 = vunpack.c.l.b16 %v369
    %v378 = vpack.c.b16 %v377, %v376
    %v383 = vunpack.c.l.b16 %v370
    %v384 = vunpack.c.l.b16 %v371
    %v385 = vunpack.c.l.b16 %v372
    %v386 = vunpack.c.l.b16 %v373
    %v387 = vpack.c.b16 %v384, %v383
    %v388 = vpack.c.b16 %v386, %v385
    %vm391 = vcmask 261120
    %v393 = vsel %vm391, %v378, 0
    %395 = vmatprep.subr.bf16.mxu0 0
    %396 = vmatpush1.bf16.msra.mxu0 0
    %397 = vmatprep.subr.bf16.mxu0 0
    %398 = vmatpush1.bf16.msra.mxu0 0
    %399 = vmatprep.subr.bf16.mxu0 0
    %400 = vmatpush1.bf16.msra.mxu0 0
    %401 = vmatprep.subr.bf16.mxu0 0
    %402 = vmatpush1.bf16.msra.mxu0 0
    %403 = vmatprep.subr.bf16.mxu0 0
    %404 = vmatpush1.bf16.msra.mxu0 0
    %405 = vmatprep.subr.bf16.mxu0 0
    %406 = vmatpush1.bf16.msra.mxu0 0
    %407 = vmatprep.subr.bf16.mxu0 0
    %408 = vmatpush1.bf16.msra.mxu0 %v388
    %409 = vmatprep.subr.bf16.mxu0 0
    %410 = vmatpush1.bf16.msra.mxu0 %v387
    %411 = vmatprep.subr.bf16.mxu0 0
    %412 = vmatpush2.bf16.msra.mxu0 0
    %413 = vmatprep.subr.bf16.mxu0 0
    %414 = vmatpush2.bf16.msra.mxu0 0
    %415 = vmatprep.subr.bf16.mxu0 0
    %416 = vmatpush2.bf16.msra.mxu0 0
    %417 = vmatprep.subr.bf16.mxu0 0
    %418 = vmatpush2.bf16.msra.mxu0 0
    %419 = vmatprep.subr.bf16.mxu0 0
    %420 = vmatpush2.bf16.msra.mxu0 0
    %421 = vmatprep.subr.bf16.mxu0 0
    %422 = vmatpush2.bf16.msra.mxu0 0
    %423 = vmatprep.subr.bf16.mxu0 0
    %424 = vmatpush2.bf16.msra.mxu0 0
    %425 = vmatprep.subr.bf16.mxu0 0
    %426 = vmatpush2.bf16.msra.mxu0 0
    %427 = vmatprep.mubr.bf16.mxu0 0
    %428 = vmatmul.mubr.bf16.gmra.mxu0 %v393
    %v429 = vpop.f32.mrf.mxu0
    %v430 = vadd.f32 0.0, %v429
    %v431 = vpop.f32.mrf.mxu0
    %v432 = vpop.f32.mrf.mxu0
    %v433 = vadd.f32 0.0, %v432
    %v434 = vpop.f32.mrf.mxu0
    %435 = vdwg.mxu0
    %v436 = vlaneseq
    %v437 = vand.u32 %v436, 127
    %s438 = smul.u32 0, 128
    %s439 = ssub.s32 64, %s438
    %v440 = vstv %s439
    %vm441 = vcmp.lt.s32.totalorder %v437, %v440
    %v442 = vsel %vm441, %v430, -1e+30
    %v443 = vsel %vm441, %v433, -1e+30
    %v444 = vld [vmem:[#allocation2] sm:$0xff]
    %v445 = vld [vmem:[#allocation2 + $0x8] sm:$0xff]
    %446 = vmax.xlane.f32.xlu0 %v442
    %v447 = vpop.xlane.xlu0 %446
    %448 = vmax.xlane.f32.xlu0 %v443
    %v449 = vpop.xlane.xlu0 %448
    %v450 = vmax.f32 %v444, %v447
    %v451 = vmax.f32 %v445, %v449
    %v452 = vld [vmem:[#allocation3] sm:$0xff]
    %v453 = vld [vmem:[#allocation3 + $0x8] sm:$0xff]
    %v454 = vsub.f32 %v444, %v450
    %v455 = vsub.f32 %v445, %v451
    %v456 = vmul.f32 %v454, 1.442695
    %v457 = vpow.pop %v456
    %v458 = vmul.f32 %v455, 1.442695
    %v459 = vpow.pop %v458
    %v460 = vmul.f32 %v452, %v457
    %v461 = vmul.f32 %v453, %v459
    %463 = vset.pattern.permute.xlu0 0
    %464 = vperm.xlu0 %463, %v450
    %v465 = vpop.permute.xlu0 %464
    %468 = vset.pattern.permute.xlu0 0
    %469 = vperm.xlu0 %468, %v451
    %v470 = vpop.permute.xlu0 %469
    %v472 = vsub.f32 %v442, %v465
    %v473 = vsub.f32 %v443, %v470
    %v474 = vmul.f32 %v472, 1.442695
    %v475 = vpow.pop %v474
    %v476 = vmul.f32 %v473, 1.442695
    %v477 = vpow.pop %v476
    %478 = vadd.xlane.f32.xlu0 %v475
    %v479 = vpop.xlane.xlu0 %478
    %480 = vadd.xlane.f32.xlu0 %v477
    %v481 = vpop.xlane.xlu0 %480
    %v482 = vadd.f32 %v460, %v479
    %v483 = vadd.f32 %v461, %v481
    %vm484 = vcmask 7168
    %485 = vst.msk [vmem:[#allocation3] sm:$0xff] %vm484, %v482
    %486 = vst.msk [vmem:[#allocation3 + $0x8] sm:$0xff] %vm484, %v483
    %487 = vst.msk [vmem:[#allocation2] sm:$0xff] %vm484, %v450
    %488 = vst.msk [vmem:[#allocation2 + $0x8] sm:$0xff] %vm484, %v451
    // Predicated region
    $region30: #{tpu_custom_call.1} parent=1 // pred_check
      %p489 = pneg %p30
    $region31: #{tpu_custom_call.1} parent=1 // pred_check_branch
      %491 = sbr.rel (%p489) target = $region33
    $region32: #{tpu_custom_call.1} parent=1 // pred_region
      %v492 = vld [vmem:[#allocation2] sm:$0xff]
      %v493 = vld [vmem:[#allocation2 + $0x8] sm:$0xff]
      %v494 = vld [vmem:[#allocation3] sm:$0xff]
      %v495 = vld [vmem:[#allocation3 + $0x8] sm:$0xff]
      %v496 = vlog2.pop %v494
      %v497 = vmul.f32 %v496, 0.6931472
      %v498 = vlog2.pop %v495
      %v499 = vmul.f32 %v498, 0.6931472
      %v500 = vadd.f32 %v492, %v497
      %v501 = vadd.f32 %v493, %v499
      %v502 = vld [vmem:[#allocation4] sm:$0xff]
      %v503 = vld [vmem:[#allocation4 + $0x8] sm:$0xff]
      %v504 = vsub.f32 %v502, %v500
      %v505 = vsub.f32 %v503, %v501
      %v506 = vld [vmem:[%s4] sm:$0xff]
      %v507 = vld [vmem:[%s4 + $0x8] sm:$0xff]
      %v508 = vmul.f32 %v504, %v506
      %v509 = vmul.f32 %v505, %v507
      %v510 = vsel %vm484, %v508, 0.0
      %v511 = vsel %vm484, %v509, 0.0
      %v512 = vadd.f32 %v510, %v511
      %v513 = vrot.slane %v512, 4
      %v514 = vadd.f32 %v512, %v513
      %v515 = vrot.slane %v514, 2
      %v516 = vadd.f32 %v514, %v515
      %v517 = vrot.slane %v516, 1
      %v518 = vadd.f32 %v516, %v517
      %v519 = vlaneseq
      %v520 = vshrl.u32 %v519, 7
      %v521 = vld [vmem:[#allocation9] sm:$0xff]
      %vm522 = vcmp.eq.s32.totalorder %v520, 0
      %vm523 = vcmp.eq.s32.totalorder %v437, 1
      %vm524 = vmand %vm522, %vm523
      %526 = vset.pattern.permute.xlu0 0
      %527 = vperm.xlu0 %526, %v518
      %v528 = vpop.permute.xlu0 %527
      %v530 = vsel %vm524, %v528, 0.0
      %v531 = vadd.f32 %v521, %v530
      %532 = vst [vmem:[#allocation9] sm:$0xff] %v531
    $region33: #{tpu_custom_call.1} parent=1 // pred_fallthru
      _
    // Predicated region
    $region34: #{tpu_custom_call.1} parent=1 // pred_check
      _
    $region35: #{tpu_custom_call.1} parent=1 // pred_check_branch
      %534 = sbr.rel (0) target = $region37
    $region36: #{tpu_custom_call.1} parent=1 // pred_region
      %s536 = ssub.s32 256, 256
      %537 = vsyncadd [#allocation6], %s536
      %s538 = sshll.u32 [#allocation5], 4
      %s539 = int_to_ptr.vmem [resolvable:$true] %s538
      %544 = dma.vmem_to_hbm [thread:$0]  %s539, 256, %s6, [#allocation6], 128, 128, 8
    $region37: #{tpu_custom_call.1} parent=1 // pred_fallthru
      _
    // Predicated region
    $region38: #{tpu_custom_call.1} parent=1 // pred_check
      _
    $region39: #{tpu_custom_call.1} parent=1 // pred_check_branch
      %546 = sbr.rel (0) target = $region41
    $region40: #{tpu_custom_call.1} parent=1 // pred_region
      %s548 = ssub.s32 128, 128
      %549 = vsyncadd [#allocation8], %s548
      %s550 = sshll.u32 [#allocation7], 4
      %s551 = int_to_ptr.vmem [resolvable:$true] %s550
      %556 = dma.vmem_to_hbm [thread:$0]  %s551, 128, %s7, [#allocation8], 64, 64, 4
    $region41: #{tpu_custom_call.1} parent=1 // pred_fallthru
      _
    // Predicated region
    $region42: #{tpu_custom_call.1} parent=1 // pred_check
      _
    $region43: #{tpu_custom_call.1} parent=1 // pred_check_branch
      %558 = sbr.rel (0) target = $region45
    $region44: #{tpu_custom_call.1} parent=1 // pred_region
      _
    $region45: #{tpu_custom_call.1} parent=1 // pred_fallthru
      _
    // Predicated region
    $region46: #{tpu_custom_call.1} parent=1 // pred_check
      _
    $region47: #{tpu_custom_call.1} parent=1 // pred_check_branch
      %560 = sbr.rel (0) target = $region49
    $region48: #{tpu_custom_call.1} parent=1 // pred_region
      %s562 = ssub.s32 128, 128
      %563 = vsyncadd [#allocation8], %s562
      %s565 = sshll.u32 [#allocation9], 4
      %s566 = int_to_ptr.vmem [resolvable:$true] %s565
      %568 = dma.vmem_to_hbm [thread:$0]  %s566, 128, %s9, [#allocation8]
    $region49: #{tpu_custom_call.1} parent=1 // pred_fallthru
      _
    // Predicated region
    $region50: #{tpu_custom_call.1} parent=1 // pred_check
      _
    $region51: #{tpu_custom_call.1} parent=1 // pred_check_branch
      %570 = sbr.rel (0) target = $region53
    $region52: #{tpu_custom_call.1} parent=1 // pred_region
      %571 = dma.done [#allocation6], 256
    $region53: #{tpu_custom_call.1} parent=1 // pred_fallthru
      _
    // Predicated region
    $region54: #{tpu_custom_call.1} parent=1 // pred_check
      _
    $region55: #{tpu_custom_call.1} parent=1 // pred_check_branch
      %573 = sbr.rel (0) target = $region57
    $region56: #{tpu_custom_call.1} parent=1 // pred_region
      %574 = dma.done [#allocation8], 128
    $region57: #{tpu_custom_call.1} parent=1 // pred_fallthru
      _
    // Predicated region
    $region58: #{tpu_custom_call.1} parent=1 // pred_check
      _
    $region59: #{tpu_custom_call.1} parent=1 // pred_check_branch
      %576 = sbr.rel (0) target = $region61
    $region60: #{tpu_custom_call.1} parent=1 // pred_region
      _
    $region61: #{tpu_custom_call.1} parent=1 // pred_fallthru
      _
    // Predicated region
    $region62: #{tpu_custom_call.1} parent=1 // pred_check
      _
    $region63: #{tpu_custom_call.1} parent=1 // pred_check_branch
      %578 = sbr.rel (0) target = $region65
    $region64: #{tpu_custom_call.1} parent=1 // pred_region
      %579 = dma.done [#allocation8], 128
    $region65: #{tpu_custom_call.1} parent=1 // pred_fallthru
      _
    %580 = vsyncpa [#allocation6], 1
    %581 = vsyncpa [#allocation8], 1

</llo_original>
